<compile_context>
chip_gen: v7x
topology: tpu7x:2x2x1
jax: 0.10.0
libtpu: 0.0.40
codegen_flags: <defaults>
</compile_context>

<pallas_src>
import jax
import jax.numpy as jnp
from jax.experimental import pallas as pl
from jax.experimental.pallas import tpu as pltpu


def _hbm_copy_kernel(x_hbm, o_hbm, sem):
    # Identity copy, entirely as one HBM->HBM DMA (no VMEM staging, no vld/vst).
    cp = pltpu.make_async_copy(x_hbm, o_hbm, sem)
    cp.start()
    cp.wait()


def pallas_reshape(x, shape, *, force_materialize=False):
    """Pallas equivalent of `Reshape(shape).forward(x)` == x.view((B,)+shape).

    By default this is a free metadata reshape (exactly what torch's .view is).
    Set `force_materialize=True` only if a freshly materialized buffer is
    genuinely required; that path issues a single HBM->HBM DMA copy.
    """
    out_shape = (x.shape[0],) + tuple(shape)

    if not force_materialize:
        # A reshape of a row-major array is metadata/bitcast: zero HBM traffic.
        # Strictly faster than any copy kernel on v5e/v6e/v7x.
        return x.reshape(out_shape)

    # --- explicit materialization path (opt-in) -----------------------------
    # Reshape first (metadata), then DMA the whole tensor HBM->HBM so src/dst
    # refs have identical shapes.  Single large DMA: bounded only by HBM BW.
    flat = x.reshape(out_shape)
    total_bytes = x.size * x.dtype.itemsize

    return pl.pallas_call(
        _hbm_copy_kernel,
        out_shape=jax.ShapeDtypeStruct(out_shape, x.dtype),
        in_specs=[pl.BlockSpec(memory_space=pl.ANY)],    # raw HBM ref, no auto-DMA
        out_specs=pl.BlockSpec(memory_space=pl.ANY),     # raw HBM ref, no auto-DMA
        scratch_shapes=[pltpu.SemaphoreType.DMA],
        # Zero flops, pure memory traffic: help XLA schedule/overlap it.
        cost_estimate=pl.CostEstimate(
            flops=0,
            transcendentals=0,
            bytes_accessed=2 * total_bytes,
        ),
    )(flat)


if __name__ == "__main__":
    key = jax.random.PRNGKey(0)

    # Small shapes consistent with the module: NCHW input (2, 4, 16, 16),
    # Reshape target shape = (16, 64) -> output (2, 16, 64).
    B, C, H, W = 2, 4, 16, 16
    target_shape = (16, 64)

    x = jax.random.normal(key, (B, C, H, W), dtype=jnp.float32)
    ref = x.reshape((B,) + target_shape)

    # Default path: free metadata reshape (the recommended way to run this op).
    y_view = pallas_reshape(x, target_shape)
    y_view = jax.block_until_ready(y_view)

    # Opt-in path: exercise the Pallas HBM->HBM DMA copy kernel once.
    y_copy = pallas_reshape(x, target_shape, force_materialize=True)
    y_copy = jax.block_until_ready(y_copy)

    assert y_view.shape == (B,) + target_shape, y_view.shape
    assert y_copy.shape == (B,) + target_shape, y_copy.shape
    assert y_view.dtype == x.dtype and y_copy.dtype == x.dtype
    assert bool(jnp.array_equal(y_view, ref))
    assert bool(jnp.array_equal(y_copy, ref))

    print("KERNEL_OK")
</pallas_src>

<mosaic_0001>
module attributes {stable_mosaic.version = 11 : i64} {
  func.func @_hbm_copy_kernel(%arg0: memref<2x16x64xf32, #tpu.memory_space<any>>, %arg1: memref<2x16x64xf32, #tpu.memory_space<any>>, %arg2: memref<!tpu.dma_semaphore, #tpu.memory_space<semaphore_mem>>) attributes {dimension_semantics = [], scalar_prefetch = 0 : i64, scratch_operands = 1 : i64, tpu.core_type = #tpu.core_type<tc>} {
    tpu.enqueue_dma source(%arg0 : memref<2x16x64xf32, #tpu.memory_space<any>>) target(%arg1 : memref<2x16x64xf32, #tpu.memory_space<any>>) target_semaphore(%arg2 : memref<!tpu.dma_semaphore, #tpu.memory_space<semaphore_mem>>)
    tpu.wait_dma2 semaphore(%arg2 : memref<!tpu.dma_semaphore, #tpu.memory_space<semaphore_mem>>) src(%arg0 : memref<2x16x64xf32, #tpu.memory_space<any>>) dst(%arg1 : memref<2x16x64xf32, #tpu.memory_space<any>>)
    return
  }
}

</mosaic_0001>

<llo_original>
// kernel: tpu_custom_call.1
$region0: #{tpu_custom_call.1}
  #allocation0 [shape = 'u32[]', space=smem, size = 0x4, offset = 0x4, fixed_abs, tag = 'smem constant byte address 0x4 - core index']
  #allocation1 [shape = 'u32[144,128]{1,0:T(1,128)}', space=vmem, size = 0x12000, scoped, tag = 'internal scratch']
  #allocation2 [shape = 's32[1]{0}', space=sflag, size = 0x4, scoped, tag = 'scratch operand']
  #allocation3 [shape = 's32[]', space=sflag, size = 0x4, offset = 0, fixed_abs, tag = 'sflag constant byte address 0x0 - dummy sync flag']
  #allocation4 [shape = 'u32[0]{0}', space=smem, size = 0, offset = 0, fixed_abs, tag = 'smem constant byte address 0x0 - null']
  %s0 = inlined_call_operand.hbm [shape: f32[2,16,64], index: 0, kind: input, shape index: {}]
  %s1 = inlined_call_operand.hbm [shape: f32[2,16,64], index: 1, kind: output, shape index: {}]
  %s2 = sld [smem:[#allocation0]]
  $region2: #{tpu_custom_call.1} parent=0
    _
  %s4 = ssub.s32 1, %s2
  %s5 = scalar_select 0, %s4, %s2
  %s7 = sshll.u32 1, 14
  %s8 = sxor.u32 4294967295, %s7
  %s11 = sshll.u32 3, 24
  %s12 = sxor.u32 4294967295, %s11
  %s13 = sand.u32 0, %s12
  %s15 = sor.u32 %s13, 0
  %18 = dma.general %s0, 512, %s1, [#allocation2], [#allocation3], [#allocation4], %s15, 0
  %s19 = smul.u32 2, 16
  %s20 = smul.u32 %s19, 1
  %s21 = sshll.u32 %s20, 4
  %22 = dma.done [#allocation2], %s21
  %23 = vsyncmov [#allocation2]
  %s24 = vpop.sfrf %23
  %p25 = scmp.eq.s32.totalorder %s24, 0
  %p26 = pneg %p25
  %28 = shalt.err (%p26)

</llo_original>
